<compile_context>
chip_gen: v6e
topology: v6e:2x2x1
jax: 0.10.0
libtpu: 0.0.40
codegen_flags: <defaults>
</compile_context>

<pallas_src>
import jax
import jax.numpy as jnp
from jax.experimental import pallas as pl
from jax.experimental.pallas import tpu as pltpu

NUM_NODES = 16      # N  (small synthetic graph)
F_IN = 8            # predict_set.num_node_features (synthetic)
H1 = 40             # conv1 out channels
H2 = 24             # conv2 out channels
LANE = 128          # lane-dense logit / output width
NEG_PAD = -1e30     # bias for the padded logit lanes (exp underflows to 0)

# packed weight slab layout: rows 0:2*H1 = W2_cat padded to 128 cols,
#                            rows 2*H1:2*H1+2*F_IN = W1_cat in cols 0:H1
W_ROWS = 2 * H1 + 2 * F_IN   # 96


def gsg_kernel(ax_ref, w_ref, b_ref, out_ref):
    # ax_ref: (1, N, N+F_IN)  -> [A_mean | x] for the current graph
    # w_ref : (96, 128)       -> packed [W2_cat(padded) ; W1_cat]
    # b_ref : (2, 128)        -> row 0 = b1 (cols :H1), row 1 = b2 (pad = -1e30)
    ax = ax_ref[0]                                    # (N, N+F_IN)
    a = ax[:, :NUM_NODES]                             # (N, N) row-normalized adj
    x = ax[:, NUM_NODES:]                             # (N, F_IN)

    w2 = w_ref[: 2 * H1, :]                           # (2*H1, 128)
    w1 = w_ref[2 * H1:, :H1]                          # (2*F_IN, H1)
    b1 = b_ref[0:1, :H1]                              # (1, H1)
    b2 = b_ref[1:2, :]                                # (1, 128)

    # ---- SAGEConv 1 (fused: [A@x | x] @ [W1_l ; W1_r] + b1) ----
    agg1 = jnp.dot(a, x, preferred_element_type=jnp.float32)         # (N, F_IN)
    cat1 = jnp.concatenate([agg1, x], axis=1)                        # (N, 2*F_IN)
    h1 = jnp.dot(cat1, w1, preferred_element_type=jnp.float32) + b1  # (N, H1)
    h1 = jnp.maximum(h1, 0.0)                                        # ReLU
    # dropout(p=0.5, training=False) -> identity

    # ---- SAGEConv 2 (fused, logits lane-padded to 128) ----
    agg2 = jnp.dot(a, h1, preferred_element_type=jnp.float32)        # (N, H1)
    cat2 = jnp.concatenate([agg2, h1], axis=1)                       # (N, 2*H1)
    h2 = jnp.dot(cat2, w2, preferred_element_type=jnp.float32) + b2  # (N, 128)

    # ---- log_softmax along dim=1 (pad lanes hold -1e30 -> exp == 0) ----
    m = jnp.max(h2, axis=1, keepdims=True)
    z = h2 - m
    lse = jnp.log(jnp.sum(jnp.exp(z), axis=1, keepdims=True))
    out_ref[0] = z - lse                              # single unmasked (N,128) store


def gsgnet_forward(ax, w_slab, b_slab):
    """Batched Pallas call: grid over graphs, per-graph problem lives in VMEM."""
    bsz, n, _ = ax.shape
    out = pl.pallas_call(
        gsg_kernel,
        out_shape=jax.ShapeDtypeStruct((bsz, n, LANE), jnp.float32),
        grid_spec=pltpu.PrefetchScalarGridSpec(
            num_scalar_prefetch=0,
            grid=(bsz,),
            in_specs=[
                pl.BlockSpec((1, n, n + F_IN), lambda b: (b, 0, 0)),
                pl.BlockSpec((W_ROWS, LANE), lambda b: (0, 0)),   # shared weights
                pl.BlockSpec((2, LANE), lambda b: (0, 0)),        # shared biases
            ],
            out_specs=pl.BlockSpec((1, n, LANE), lambda b: (b, 0, 0)),
        ),
        compiler_params=pltpu.CompilerParams(
            dimension_semantics=("parallel",)),
    )(ax, w_slab, b_slab)
    return out[:, :, :H2]


def build_mean_adjacency(edge_index, num_nodes):
    """Dense row-normalized adjacency: A[i, j] = (#edges j->i) / in_degree(i)."""
    src = edge_index[0]
    dst = edge_index[1]
    a = jnp.zeros((num_nodes, num_nodes), jnp.float32)
    a = a.at[dst, src].add(1.0)
    deg = jnp.sum(a, axis=1, keepdims=True)
    return a / jnp.maximum(deg, 1.0)


def init_params(key):
    ks = jax.random.split(key, 6)
    scale1 = 1.0 / jnp.sqrt(F_IN)
    scale2 = 1.0 / jnp.sqrt(H1)
    return {
        # stored pre-transposed: [in, out] so the kernel does x @ W
        "w1_l": jax.random.uniform(ks[0], (F_IN, H1), jnp.float32, -scale1, scale1),
        "w1_r": jax.random.uniform(ks[1], (F_IN, H1), jnp.float32, -scale1, scale1),
        "b1":   jax.random.uniform(ks[2], (1, H1),    jnp.float32, -scale1, scale1),
        "w2_l": jax.random.uniform(ks[3], (H1, H2),   jnp.float32, -scale2, scale2),
        "w2_r": jax.random.uniform(ks[4], (H1, H2),   jnp.float32, -scale2, scale2),
        "b2":   jax.random.uniform(ks[5], (1, H2),    jnp.float32, -scale2, scale2),
    }


def pack_weights(params):
    """Host-side packing: fused W_cat slab + lane-dense bias slab."""
    w1_cat = jnp.concatenate([params["w1_l"], params["w1_r"]], axis=0)  # (2*F_IN, H1)
    w2_cat = jnp.concatenate([params["w2_l"], params["w2_r"]], axis=0)  # (2*H1, H2)

    w_slab = jnp.zeros((W_ROWS, LANE), jnp.float32)
    w_slab = w_slab.at[: 2 * H1, :H2].set(w2_cat)             # pad cols -> 0
    w_slab = w_slab.at[2 * H1:, :H1].set(w1_cat)

    b_slab = jnp.zeros((2, LANE), jnp.float32)
    b_slab = b_slab.at[0, :H1].set(params["b1"][0])
    b_slab = b_slab.at[1, :].set(NEG_PAD)                     # inert padded logits
    b_slab = b_slab.at[1, :H2].set(params["b2"][0])
    return w_slab, b_slab


def gsgnet_ref(a, x, params):
    """Pure-JAX reference of the original forward pass (single graph)."""
    agg1 = a @ x
    h1 = jnp.maximum(agg1 @ params["w1_l"] + params["b1"] + x @ params["w1_r"], 0.0)
    agg2 = a @ h1
    h2 = agg2 @ params["w2_l"] + params["b2"] + h1 @ params["w2_r"]
    return jax.nn.log_softmax(h2, axis=1)


if __name__ == "__main__":
    key = jax.random.PRNGKey(0)
    k_x, k_e, k_p = jax.random.split(key, 3)

    # Synthetic batch: 4 graphs, 16 nodes each, 8 input features, 48 edges each.
    B = 4
    x = jax.random.normal(k_x, (B, NUM_NODES, F_IN), jnp.float32)
    edge_index = jax.random.randint(k_e, (B, 2, 48), 0, NUM_NODES, jnp.int32)

    a_mean = jax.vmap(lambda e: build_mean_adjacency(e, NUM_NODES))(edge_index)
    params = init_params(k_p)
    w_slab, b_slab = pack_weights(params)

    # Per-graph input slab: [A_mean | x]  -> (B, N, N + F_IN)
    ax = jnp.concatenate([a_mean, x], axis=-1)

    out = gsgnet_forward(ax, w_slab, b_slab)
    out = jax.block_until_ready(out)

    ref = jax.vmap(gsgnet_ref, in_axes=(0, 0, None))(a_mean, x, params)

    assert out.shape == (B, NUM_NODES, H2)
    assert bool(jnp.all(jnp.isfinite(out)))
    # rows of log_softmax must exp-sum to 1
    assert bool(jnp.allclose(jnp.sum(jnp.exp(out), axis=-1), 1.0, atol=1e-5))
    # match the unfused pure-JAX reference
    assert bool(jnp.allclose(out, ref, atol=1e-4, rtol=1e-4))
    print("KERNEL_OK")
</pallas_src>

<mosaic_0001>
module attributes {stable_mosaic.version = 11 : i64} {
  func.func @gsg_kernel(%arg0: i32, %arg1: memref<1x16x24xf32, #tpu.memory_space<vmem>>, %arg2: memref<96x128xf32, #tpu.memory_space<vmem>>, %arg3: memref<2x128xf32, #tpu.memory_space<vmem>>, %arg4: memref<1x16x128xf32, #tpu.memory_space<vmem>>) attributes {dimension_semantics = [#tpu.dimension_semantics<parallel>], iteration_bounds = array<i64: 4>, scalar_prefetch = 0 : i64, scratch_operands = 0 : i64, tpu.core_type = #tpu.core_type<tc>, window_params = [{transform_indices = @transform_0, window_bounds = array<i64: 1, 16, 24>}, {pipeline_mode = #tpu.pipeline_mode<synchronous>, transform_indices = @transform_1, window_bounds = array<i64: 96, 128>}, {pipeline_mode = #tpu.pipeline_mode<synchronous>, transform_indices = @transform_2, window_bounds = array<i64: 2, 128>}, {transform_indices = @transform_3, window_bounds = array<i64: 1, 16, 128>}]} {
    %c0 = arith.constant 0 : index
    %c0_0 = arith.constant 0 : index
    %c0_1 = arith.constant 0 : index
    %0 = vector.load %arg1[%c0, %c0_0, %c0_1] : memref<1x16x24xf32, #tpu.memory_space<vmem>>, vector<1x16x24xf32>
    %1 = vector.shape_cast %0 : vector<1x16x24xf32> to vector<16x24xf32>
    %2 = vector.extract_strided_slice %1 {offsets = [0, 0], sizes = [16, 16], strides = [1, 1]} : vector<16x24xf32> to vector<16x16xf32>
    %3 = vector.extract_strided_slice %1 {offsets = [0, 16], sizes = [16, 8], strides = [1, 1]} : vector<16x24xf32> to vector<16x8xf32>
    %c0_2 = arith.constant 0 : index
    %c0_3 = arith.constant 0 : index
    %4 = vector.load %arg2[%c0_2, %c0_3] : memref<96x128xf32, #tpu.memory_space<vmem>>, vector<80x128xf32>
    %c80 = arith.constant 80 : index
    %c0_4 = arith.constant 0 : index
    %5 = vector.load %arg2[%c80, %c0_4] : memref<96x128xf32, #tpu.memory_space<vmem>>, vector<16x40xf32>
    %c0_5 = arith.constant 0 : index
    %c0_6 = arith.constant 0 : index
    %6 = vector.load %arg3[%c0_5, %c0_6] : memref<2x128xf32, #tpu.memory_space<vmem>>, vector<1x40xf32>
    %c1 = arith.constant 1 : index
    %c0_7 = arith.constant 0 : index
    %7 = vector.load %arg3[%c1, %c0_7] : memref<2x128xf32, #tpu.memory_space<vmem>>, vector<1x128xf32>
    %cst = arith.constant dense<0.000000e+00> : vector<16x8xf32>
    %8 = tpu.matmul %2, %3, %cst {dimension_numbers = #tpu.dot_dimension_numbers<[1], [0], [0], [1], [0, 0, 1, 1], [], []>} : vector<16x16xf32>, vector<16x8xf32>, vector<16x8xf32> -> vector<16x8xf32>
    %9 = tpu.concatenate %8, %3 in 1 : vector<16x8xf32>, vector<16x8xf32> -> vector<16x16xf32>
    %cst_8 = arith.constant dense<0.000000e+00> : vector<16x40xf32>
    %10 = tpu.matmul %9, %5, %cst_8 {dimension_numbers = #tpu.dot_dimension_numbers<[1], [0], [0], [1], [0, 0, 1, 1], [], []>} : vector<16x16xf32>, vector<16x40xf32>, vector<16x40xf32> -> vector<16x40xf32>
    %11 = vector.broadcast %6 : vector<1x40xf32> to vector<16x40xf32>
    %12 = arith.addf %10, %11 : vector<16x40xf32>
    %cst_9 = arith.constant 0.000000e+00 : f32
    %13 = vector.broadcast %cst_9 : f32 to vector<16x40xf32>
    %14 = arith.maximumf %12, %13 : vector<16x40xf32>
    %cst_10 = arith.constant dense<0.000000e+00> : vector<16x40xf32>
    %15 = tpu.matmul %2, %14, %cst_10 {dimension_numbers = #tpu.dot_dimension_numbers<[1], [0], [0], [1], [0, 0, 1, 1], [], []>} : vector<16x16xf32>, vector<16x40xf32>, vector<16x40xf32> -> vector<16x40xf32>
    %16 = tpu.concatenate %15, %14 in 1 : vector<16x40xf32>, vector<16x40xf32> -> vector<16x80xf32>
    %cst_11 = arith.constant dense<0.000000e+00> : vector<16x128xf32>
    %17 = tpu.matmul %16, %4, %cst_11 {dimension_numbers = #tpu.dot_dimension_numbers<[1], [0], [0], [1], [0, 0, 1, 1], [], []>} : vector<16x80xf32>, vector<80x128xf32>, vector<16x128xf32> -> vector<16x128xf32>
    %18 = vector.broadcast %7 : vector<1x128xf32> to vector<16x128xf32>
    %19 = arith.addf %17, %18 : vector<16x128xf32>
    %cst_12 = arith.constant dense<0xFF800000> : vector<16xf32>
    %20 = vector.multi_reduction <maximumf>, %19, %cst_12 [1] : vector<16x128xf32> to vector<16xf32>
    %21 = vector.shape_cast %20 : vector<16xf32> to vector<16x1xf32>
    %22 = vector.broadcast %21 : vector<16x1xf32> to vector<16x128xf32>
    %23 = arith.subf %19, %22 : vector<16x128xf32>
    %24 = math.exp %23 : vector<16x128xf32>
    %cst_13 = arith.constant dense<0.000000e+00> : vector<16xf32>
    %25 = vector.multi_reduction <add>, %24, %cst_13 [1] : vector<16x128xf32> to vector<16xf32>
    %26 = vector.shape_cast %25 : vector<16xf32> to vector<16x1xf32>
    %27 = math.log %26 : vector<16x1xf32>
    %28 = vector.broadcast %27 : vector<16x1xf32> to vector<16x128xf32>
    %29 = arith.subf %23, %28 : vector<16x128xf32>
    %c0_14 = arith.constant 0 : index
    %c0_15 = arith.constant 0 : index
    %c0_16 = arith.constant 0 : index
    %30 = vector.load %arg4[%c0_14, %c0_15, %c0_16] : memref<1x16x128xf32, #tpu.memory_space<vmem>>, vector<1x16x128xf32>
    %31 = vector.shape_cast %30 : vector<1x16x128xf32> to vector<16x128xf32>
    %32 = vector.shape_cast %29 : vector<16x128xf32> to vector<1x16x128xf32>
    tpu.vector_store %arg4[%c0_14, %c0_15, %c0_16], %32 {strides = array<i32>} : memref<1x16x128xf32, #tpu.memory_space<vmem>>, vector<1x16x128xf32>,
    return
  }
  func.func @transform_0(%arg0: i32) -> (i32, i32, i32) {
    %c0_i32 = arith.constant 0 : i32
    %c0_i32_0 = arith.constant 0 : i32
    %c0_i32_1 = arith.constant 0 : i32
    return %arg0, %c0_i32, %c0_i32_0 : i32, i32, i32
  }
  func.func @transform_1(%arg0: i32) -> (i32, i32) {
    %c0_i32 = arith.constant 0 : i32
    %c0_i32_0 = arith.constant 0 : i32
    %c0_i32_1 = arith.constant 0 : i32
    return %c0_i32, %c0_i32_0 : i32, i32
  }
  func.func @transform_2(%arg0: i32) -> (i32, i32) {
    %c0_i32 = arith.constant 0 : i32
    %c0_i32_0 = arith.constant 0 : i32
    %c0_i32_1 = arith.constant 0 : i32
    return %c0_i32, %c0_i32_0 : i32, i32
  }
  func.func @transform_3(%arg0: i32) -> (i32, i32, i32) {
    %c0_i32 = arith.constant 0 : i32
    %c0_i32_0 = arith.constant 0 : i32
    %c0_i32_1 = arith.constant 0 : i32
    return %arg0, %c0_i32, %c0_i32_0 : i32, i32, i32
  }
}

</mosaic_0001>

<llo_original>
// kernel: tpu_custom_call.1
$region0: #{tpu_custom_call.1}
  #allocation0 [shape = 'u32[]', space=smem, size = 0x4, offset = 0x4, fixed_abs, tag = 'smem constant byte address 0x4 - core index']
  #allocation1 [shape = 'u32[144,128]{1,0:T(1,128)}', space=vmem, size = 0x12000, scoped, tag = 'internal scratch']
  %s0 = inlined_call_operand.hbm [shape: f32[4,16,24], index: 0, kind: input, shape index: {}]
  %s1 = inlined_call_operand.hbm [shape: f32[96,128], index: 1, kind: input, shape index: {}]
  %s2 = inlined_call_operand.vmem [shape: f32[2,128], index: 2, kind: input, shape index: {}]
  %s3 = inlined_call_operand.hbm [shape: f32[4,16,128], index: 3, kind: output, shape index: {}]
  %s4 = sld [smem:[#allocation0]]
  $region53: #{tpu_custom_call.1} parent=0
    _
  %s6 = ssub.s32 1, %s4
  %s7 = scalar_select 0, %s6, %s4
  $region1: #{tpu_custom_call.1} parent=0
    #allocation2 [shape = 'u8[16384]{0}', space=vmem, size = 0x4000, scoped, tag = 'input window, operand 0']
    #allocation3 [shape = 's32[2]{0}', space=sflag, size = 0x8, scoped, tag = 'scoped memory for tpu_custom_call.1']
    #allocation4 [shape = 's32[2]{0}', space=sflag, size = 0x8, scoped, tag = 'scoped memory for tpu_custom_call.1']
    #allocation5 [shape = 'u8[49152]{0}', space=vmem, size = 0xc000, scoped, tag = 'input window, operand 1, single buffered']
    #allocation6 [shape = 's32[1]{0}', space=sflag, size = 0x4, scoped, tag = 'scoped memory for tpu_custom_call.1']
    #allocation7 [shape = 'u8[16384]{0}', space=vmem, size = 0x4000, scoped, tag = 'output window, operand 0']
    %8 = vsyncpa [#allocation3], 0
    %s9 = scalar_lea.sflag [#allocation3], 1
    %10 = vsyncpa %s9, 0
    %11 = vsyncpa [#allocation6], 0
    %12 = vsyncpa [#allocation4], 0
    %s13 = scalar_lea.sflag [#allocation4], 1
    %14 = vsyncpa %s13, 0
    loop: start=0, step=1, limit=6
    $region2: #{tpu_custom_call.1} parent=1 // loop_pre_header
      _
    $region3: #{tpu_custom_call.1} parent=1 // loop_header
      %s16 = sphi 0, %s20
      %p17 = scmp.ge.s32.totalorder %s16, 6
      %s26 = sphi 0, %s28
      %s29 = sphi 0, %s26
      %s30 = sphi 0, %s29
      %s46 = sphi 0, %s30
      %s50 = sphi 0, %s50
      %s52 = sphi 0, %s50
      %s53 = sphi 0, %s52
      %s67 = sphi 0, %s53
      %s71 = sphi 0, %s71
      %s73 = sphi 0, %s71
      %s74 = sphi 0, %s73
      %s88 = sphi 0, %s74
      %s94 = sphi 0, %s96
      %s97 = sphi 0, %s94
      %s98 = sphi 0, %s97
      %s114 = sphi 0, %s98
    $region4: #{tpu_custom_call.1} parent=1 // loop_header_branch
      %19 = sbr.rel (%p17) target = $region8
    $region5: #{tpu_custom_call.1} parent=1 // loop_body
      %s21 = ssub.s32 %s16, 1
      %s22 = ssub.s32 %s16, 2
      %s23 = sadd.s32 %s16, 1
      %s24 = ssub.s32 %s16, %s23
      %p25 = scmp.eq.s32.totalorder %s24, 0
      %s27 = sadd.s32 %s26, 1
      %s28 = scalar_select %p25, %s26, %s27
      %p31 = pneg %p25
      %p32 = scmp.eq.s32.totalorder %s16, 3
      %p33 = por %p31, %p32
      %p34 = scmp.ne.s32.totalorder %s26, %s29
      %p35 = scmp.eq.s32.totalorder %s16, 0
      %p36 = por %p34, %p35
      %p37 = scmp.ne.s32.totalorder %s26, %s29
      %p38 = scmp.eq.s32.totalorder %s21, 3
      %p39 = por %p37, %p38
      %p40 = scmp.ne.s32.totalorder %s29, %s30
      %p41 = scmp.eq.s32.totalorder %s21, 0
      %p42 = por %p40, %p41
      %p43 = scmp.ne.s32.totalorder %s29, %s30
      %p44 = scmp.eq.s32.totalorder %s22, 3
      %p45 = por %p43, %p44
      %p47 = scmp.ne.s32.totalorder %s30, %s46
      %p48 = scmp.eq.s32.totalorder %s22, 0
      %p49 = por %p47, %p48
      %s51 = sadd.s32 %s50, 1
      %p54 = scmp.eq.s32.totalorder %s16, 3
      %p55 = scmp.ne.s32.totalorder %s50, %s52
      %p56 = scmp.eq.s32.totalorder %s16, 0
      %p57 = por %p55, %p56
      %p58 = scmp.ne.s32.totalorder %s50, %s52
      %p59 = scmp.eq.s32.totalorder %s21, 3
      %p60 = por %p58, %p59
      %p61 = scmp.ne.s32.totalorder %s52, %s53
      %p62 = scmp.eq.s32.totalorder %s21, 0
      %p63 = por %p61, %p62
      %p64 = scmp.ne.s32.totalorder %s52, %s53
      %p65 = scmp.eq.s32.totalorder %s22, 3
      %p66 = por %p64, %p65
      %p68 = scmp.ne.s32.totalorder %s53, %s67
      %p69 = scmp.eq.s32.totalorder %s22, 0
      %p70 = por %p68, %p69
      %s72 = sadd.s32 %s71, 1
      %p75 = scmp.eq.s32.totalorder %s16, 3
      %p76 = scmp.ne.s32.totalorder %s71, %s73
      %p77 = scmp.eq.s32.totalorder %s16, 0
      %p78 = por %p76, %p77
      %p79 = scmp.ne.s32.totalorder %s71, %s73
      %p80 = scmp.eq.s32.totalorder %s21, 3
      %p81 = por %p79, %p80
      %p82 = scmp.ne.s32.totalorder %s73, %s74
      %p83 = scmp.eq.s32.totalorder %s21, 0
      %p84 = por %p82, %p83
      %p85 = scmp.ne.s32.totalorder %s73, %s74
      %p86 = scmp.eq.s32.totalorder %s22, 3
      %p87 = por %p85, %p86
      %p89 = scmp.ne.s32.totalorder %s74, %s88
      %p90 = scmp.eq.s32.totalorder %s22, 0
      %p91 = por %p89, %p90
      %s92 = ssub.s32 %s16, %s23
      %p93 = scmp.eq.s32.totalorder %s92, 0
      %s95 = sadd.s32 %s94, 1
      %s96 = scalar_select %p93, %s94, %s95
      %p99 = pneg %p93
      %p100 = scmp.eq.s32.totalorder %s16, 3
      %p101 = por %p99, %p100
      %p102 = scmp.ne.s32.totalorder %s94, %s97
      %p103 = scmp.eq.s32.totalorder %s16, 0
      %p104 = por %p102, %p103
      %p105 = scmp.ne.s32.totalorder %s94, %s97
      %p106 = scmp.eq.s32.totalorder %s21, 3
      %p107 = por %p105, %p106
      %p108 = scmp.ne.s32.totalorder %s97, %s98
      %p109 = scmp.eq.s32.totalorder %s21, 0
      %p110 = por %p108, %p109
      %p111 = scmp.ne.s32.totalorder %s97, %s98
      %p112 = scmp.eq.s32.totalorder %s22, 3
      %p113 = por %p111, %p112
      %p115 = scmp.ne.s32.totalorder %s98, %s114
      %p116 = scmp.eq.s32.totalorder %s22, 0
      %p117 = por %p115, %p116
      %p118 = scmp.le.s32.totalorder 1, %s16
      %p119 = scmp.lt.s32.totalorder %s16, 5
      %p120 = pnand %p118, %p119
      %p121 = pneg %p120
      // Predicated region
      $region9: #{tpu_custom_call.1} parent=5 // pred_check
        _
      $region10: #{tpu_custom_call.1} parent=5 // pred_check_branch
        %123 = sbr.rel (%p120) target = $region12
      $region11: #{tpu_custom_call.1} parent=5 // pred_region
        %s124 = ssub.s32 %s16, 1
        // Predicated region
        $region13: #{tpu_custom_call.1} parent=11 // pred_check
          %p125 = pneg %p63
        $region14: #{tpu_custom_call.1} parent=11 // pred_check_branch
          %127 = sbr.rel (%p125) target = $region16
        $region15: #{tpu_custom_call.1} parent=11 // pred_region
          %s129 = ssub.s32 1536, 1536
          %130 = vsyncadd [#allocation6], %s129
          %s131 = sshll.u32 [#allocation5], 4
          %s132 = int_to_ptr.vmem [resolvable:$true] %s131
          %137 = dma.hbm_to_vmem [thread:$0]  %s1, 1536, %s132, [#allocation6], 128, 128, 8
        $region16: #{tpu_custom_call.1} parent=11 // pred_fallthru
          _
        // Predicated region
        $region17: #{tpu_custom_call.1} parent=11 // pred_check
          %p138 = pneg %p84
        $region18: #{tpu_custom_call.1} parent=11 // pred_check_branch
          %140 = sbr.rel (%p138) target = $region20
        $region19: #{tpu_custom_call.1} parent=11 // pred_region
          _
        $region20: #{tpu_custom_call.1} parent=11 // pred_fallthru
          _
      $region12: #{tpu_custom_call.1} parent=5 // pred_fallthru
        _
      %p141 = scmp.lt.s32.totalorder %s16, 4
      // Predicated region
      $region21: #{tpu_custom_call.1} parent=5 // pred_check
        %p142 = pneg %p141
      $region22: #{tpu_custom_call.1} parent=5 // pred_check_branch
        %144 = sbr.rel (%p142) target = $region24
      $region23: #{tpu_custom_call.1} parent=5 // pred_region
        // Predicated region
        $region25: #{tpu_custom_call.1} parent=23 // pred_check
          %p145 = pneg %p36
        $region26: #{tpu_custom_call.1} parent=23 // pred_check_branch
          %147 = sbr.rel (%p145) target = $region28
        $region27: #{tpu_custom_call.1} parent=23 // pred_region
          %s148 = sand.u32 %s26, 1
          %s149 = scalar_lea.sflag [#allocation3], %s148
          %s150 = sand.u32 %s26, 1
          %s151 = smul.addr %s150, 16
          %s152 = scalar_lea.vmem [#allocation2], %s151
          %s154 = ssub.s32 256, 256
          %155 = vsyncadd %s149, %s154
          %s156 = smul.addr %s16, 2
          %s157 = smul.addr %s156, 128
          %s158 = scalar_lea.hbm %s0, %s157
          %s159 = sshll.u32 %s152, 4
          %s160 = int_to_ptr.vmem [resolvable:$true] %s159
          %165 = dma.hbm_to_vmem [thread:$0]  %s158, 256, %s160, %s149, 128, 128, 8
        $region28: #{tpu_custom_call.1} parent=23 // pred_fallthru
          _
      $region24: #{tpu_custom_call.1} parent=5 // pred_fallthru
        _
      %p166 = scmp.le.s32.totalorder 1, %s16
      %p167 = scmp.lt.s32.totalorder %s16, 5
      %p168 = pnand %p166, %p167
      %p169 = pneg %p168
      // Predicated region
      $region29: #{tpu_custom_call.1} parent=5 // pred_check
        _
      $region30: #{tpu_custom_call.1} parent=5 // pred_check_branch
        %171 = sbr.rel (%p168) target = $region32
      $region31: #{tpu_custom_call.1} parent=5 // pred_region
        %s172 = ssub.s32 %s16, 1
        %s173 = sand.u32 %s29, 1
        %s174 = scalar_lea.sflag [#allocation3], %s173
        %s175 = sand.u32 %s29, 1
        %s176 = smul.addr %s175, 16
        %s177 = scalar_lea.vmem [#allocation2], %s176
        // Predicated region
        $region33: #{tpu_custom_call.1} parent=31 // pred_check
          %p178 = pneg %p42
        $region34: #{tpu_custom_call.1} parent=31 // pred_check_branch
          %180 = sbr.rel (%p178) target = $region36
        $region35: #{tpu_custom_call.1} parent=31 // pred_region
          %181 = dma.done %s174, 256
        $region36: #{tpu_custom_call.1} parent=31 // pred_fallthru
          _
        // Predicated region
        $region37: #{tpu_custom_call.1} parent=31 // pred_check
          %p182 = pneg %p63
        $region38: #{tpu_custom_call.1} parent=31 // pred_check_branch
          %184 = sbr.rel (%p182) target = $region40
        $region39: #{tpu_custom_call.1} parent=31 // pred_region
          %185 = dma.done [#allocation6], 1536
        $region40: #{tpu_custom_call.1} parent=31 // pred_fallthru
          _
        %s186 = sand.u32 %s29, 1
        %s187 = scalar_lea.sflag [#allocation3], %s186
        %s188 = sand.u32 %s29, 1
        %s189 = smul.addr %s188, 16
        %s190 = scalar_lea.vmem [#allocation2], %s189
        %p191 = pneg %p42
        %p192 = pneg %p39
        %p193 = pneg %p63
        %p194 = pneg %p60
        %p195 = pneg %p84
        %p196 = pneg %p81
        %p197 = pneg %p110
        %p198 = pneg %p107
        %s199 = sand.u32 %s97, 1
        %s200 = scalar_lea.sflag [#allocation4], %s199
        %s201 = sand.u32 %s97, 1
        %s202 = smul.addr %s201, 16
        %s203 = scalar_lea.vmem [#allocation7], %s202
        %v204 = vld [vmem:[%s177] sm:$0xff]
        %v205 = vld [vmem:[%s177 + $0x8] sm:$0xff]
        %v206 = vld [vmem:[#allocation5] sm:$0xff]
        %v207 = vld [vmem:[#allocation5 + $0x8] sm:$0xff]
        %v208 = vld [vmem:[#allocation5 + $0x10] sm:$0xff]
        %v209 = vld [vmem:[#allocation5 + $0x18] sm:$0xff]
        %v210 = vld [vmem:[#allocation5 + $0x20] sm:$0xff]
        %v211 = vld [vmem:[#allocation5 + $0x28] sm:$0xff]
        %v212 = vld [vmem:[#allocation5 + $0x30] sm:$0xff]
        %v213 = vld [vmem:[#allocation5 + $0x38] sm:$0xff]
        %v214 = vld [vmem:[#allocation5 + $0x40] sm:$0xff]
        %v215 = vld [vmem:[#allocation5 + $0x48] sm:$0xff]
        %v216 = vld [vmem:[#allocation5 + $0x50] sm:$0xff]
        %v217 = vld [vmem:[#allocation5 + $0x58] sm:$0xff]
        %v218 = vld [vmem:[%s2] sm:$0x1]
        %v219 = vld [vmem:[%s2 + $0x1] sm:$0x1]
        %222 = vrot.lane.b32.xlu0 %v204, 112
        %v223 = vpop.permute.xlu0 %222
        %224 = vrot.lane.b32.xlu0 %v205, 112
        %v225 = vpop.permute.xlu0 %224
        %vm228 = vcmask 130048
        %v229 = vsel %vm228, %v204, 0
        %v231 = vsel %vm228, %v205, 0
        %233 = vmatprep.subr.mxu0 0.0
        %234 = vmatpush1.msra.mxu0 0.0
        %235 = vmatprep.subr.mxu0 0.0
        %236 = vmatpush1.msra.mxu0 0.0
        %237 = vmatprep.subr.mxu0 0.0
        %238 = vmatpush1.msra.mxu0 0.0
        %239 = vmatprep.subr.mxu0 0.0
        %240 = vmatpush1.msra.mxu0 0.0
        %241 = vmatprep.subr.mxu0 0.0
        %242 = vmatpush1.msra.mxu0 0.0
        %243 = vmatprep.subr.mxu0 0.0
        %244 = vmatpush1.msra.mxu0 0.0
        %245 = vmatprep.subr.mxu0 0.0
        %246 = vmatpush1.msra.mxu0 0.0
        %247 = vmatprep.subr.mxu0 0.0
        %248 = vmatpush1.msra.mxu0 0.0
        %249 = vmatprep.subr.mxu0 0.0
        %250 = vmatpush1.msra.mxu0 0.0
        %251 = vmatprep.subr.mxu0 0.0
        %252 = vmatpush1.msra.mxu0 0.0
        %253 = vmatprep.subr.mxu0 0.0
        %254 = vmatpush1.msra.mxu0 0.0
        %255 = vmatprep.subr.mxu0 0.0
        %256 = vmatpush1.msra.mxu0 0.0
        %257 = vmatprep.subr.mxu0 0.0
        %258 = vmatpush1.msra.mxu0 0.0
        %259 = vmatprep.subr.mxu0 0.0
        %260 = vmatpush1.msra.mxu0 0.0
        %261 = vmatprep.subr.mxu0 0.0
        %262 = vmatpush1.msra.mxu0 %v225
        %263 = vmatprep.subr.mxu0 0.0
        %264 = vmatpush1.msra.mxu0 %v223
        %265 = vmatprep.subr.mxu0 0.0
        %266 = vmatpush2.msra.mxu0 0.0
        %267 = vmatprep.subr.mxu0 0.0
        %268 = vmatpush2.msra.mxu0 0.0
        %269 = vmatprep.subr.mxu0 0.0
        %270 = vmatpush2.msra.mxu0 0.0
        %271 = vmatprep.subr.mxu0 0.0
        %272 = vmatpush2.msra.mxu0 0.0
        %273 = vmatprep.subr.mxu0 0.0
        %274 = vmatpush2.msra.mxu0 0.0
        %275 = vmatprep.subr.mxu0 0.0
        %276 = vmatpush2.msra.mxu0 0.0
        %277 = vmatprep.subr.mxu0 0.0
        %278 = vmatpush2.msra.mxu0 0.0
        %279 = vmatprep.subr.mxu0 0.0
        %280 = vmatpush2.msra.mxu0 0.0
        %281 = vmatprep.subr.mxu0 0.0
        %282 = vmatpush2.msra.mxu0 0.0
        %283 = vmatprep.subr.mxu0 0.0
        %284 = vmatpush2.msra.mxu0 0.0
        %285 = vmatprep.subr.mxu0 0.0
        %286 = vmatpush2.msra.mxu0 0.0
        %287 = vmatprep.subr.mxu0 0.0
        %288 = vmatpush2.msra.mxu0 0.0
        %289 = vmatprep.subr.mxu0 0.0
        %290 = vmatpush2.msra.mxu0 0.0
        %291 = vmatprep.subr.mxu0 0.0
        %292 = vmatpush2.msra.mxu0 0.0
        %293 = vmatprep.subr.mxu0 0.0
        %294 = vmatpush2.msra.mxu0 0.0
        %295 = vmatprep.subr.mxu0 0.0
        %296 = vmatpush2.msra.mxu0 0.0
        %297 = vmatprep.mubr.f32.mxu0 0.0
        %298 = vmatmul.mubr.f32.gmra.mxu0 %v229
        %v299 = vpop.f32.mrf.mxu0
        %v300 = vadd.f32 0.0, %v299
        %v301 = vpop.f32.mrf.mxu0
        %302 = vmatprep.mubr.f32.mxu0 0.0
        %303 = vmatmul.mubr.f32.gmra.mxu0 %v231
        %v304 = vpop.f32.mrf.mxu0
        %v305 = vadd.f32 0.0, %v304
        %v306 = vpop.f32.mrf.mxu0
        %307 = vdwg.mxu0
        %308 = vrot.lane.b32.xlu0 %v204, 120
        %v309 = vpop.permute.xlu0 %308
        %310 = vrot.lane.b32.xlu0 %v205, 120
        %v311 = vpop.permute.xlu0 %310
        %vm314 = vcmask 64512
        %v315 = vsel %vm314, %v300, %v309
        %v316 = vsel %vm314, %v305, %v311
        %v317 = vlaneseq
        %v318 = vshrl.u32 %v317, 7
        %v319 = vsub.s32 0, %v318
        %v320 = vrot.slane %v218, %v319
        %v322 = vsel %vm228, %v315, 0
        %v325 = vsel %vm228, %v316, 0
        %327 = vmatprep.subr.mxu0 0.0
        %328 = vmatpush1.msra.mxu0 0.0
        %329 = vmatprep.subr.mxu0 0.0
        %330 = vmatpush1.msra.mxu0 0.0
        %331 = vmatprep.subr.mxu0 0.0
        %332 = vmatpush1.msra.mxu0 0.0
        %333 = vmatprep.subr.mxu0 0.0
        %334 = vmatpush1.msra.mxu0 0.0
        %335 = vmatprep.subr.mxu0 0.0
        %336 = vmatpush1.msra.mxu0 0.0
        %337 = vmatprep.subr.mxu0 0.0
        %338 = vmatpush1.msra.mxu0 0.0
        %339 = vmatprep.subr.mxu0 0.0
        %340 = vmatpush1.msra.mxu0 0.0
        %341 = vmatprep.subr.mxu0 0.0
        %342 = vmatpush1.msra.mxu0 0.0
        %343 = vmatprep.subr.mxu0 0.0
        %344 = vmatpush1.msra.mxu0 0.0
        %345 = vmatprep.subr.mxu0 0.0
        %346 = vmatpush1.msra.mxu0 0.0
        %347 = vmatprep.subr.mxu0 0.0
        %348 = vmatpush1.msra.mxu0 0.0
        %349 = vmatprep.subr.mxu0 0.0
        %350 = vmatpush1.msra.mxu0 0.0
        %351 = vmatprep.subr.mxu0 0.0
        %352 = vmatpush1.msra.mxu0 0.0
        %353 = vmatprep.subr.mxu0 0.0
        %354 = vmatpush1.msra.mxu0 0.0
        %355 = vmatprep.subr.mxu0 0.0
        %356 = vmatpush1.msra.mxu0 %v217
        %357 = vmatprep.subr.mxu0 0.0
        %358 = vmatpush1.msra.mxu0 %v216
        %359 = vmatprep.subr.mxu0 0.0
        %360 = vmatpush2.msra.mxu0 0.0
        %361 = vmatprep.subr.mxu0 0.0
        %362 = vmatpush2.msra.mxu0 0.0
        %363 = vmatprep.subr.mxu0 0.0
        %364 = vmatpush2.msra.mxu0 0.0
        %365 = vmatprep.subr.mxu0 0.0
        %366 = vmatpush2.msra.mxu0 0.0
        %367 = vmatprep.subr.mxu0 0.0
        %368 = vmatpush2.msra.mxu0 0.0
        %369 = vmatprep.subr.mxu0 0.0
        %370 = vmatpush2.msra.mxu0 0.0
        %371 = vmatprep.subr.mxu0 0.0
        %372 = vmatpush2.msra.mxu0 0.0
        %373 = vmatprep.subr.mxu0 0.0
        %374 = vmatpush2.msra.mxu0 0.0
        %375 = vmatprep.subr.mxu0 0.0
        %376 = vmatpush2.msra.mxu0 0.0
        %377 = vmatprep.subr.mxu0 0.0
        %378 = vmatpush2.msra.mxu0 0.0
        %379 = vmatprep.subr.mxu0 0.0
        %380 = vmatpush2.msra.mxu0 0.0
        %381 = vmatprep.subr.mxu0 0.0
        %382 = vmatpush2.msra.mxu0 0.0
        %383 = vmatprep.subr.mxu0 0.0
        %384 = vmatpush2.msra.mxu0 0.0
        %385 = vmatprep.subr.mxu0 0.0
        %386 = vmatpush2.msra.mxu0 0.0
        %387 = vmatprep.subr.mxu0 0.0
        %388 = vmatpush2.msra.mxu0 0.0
        %389 = vmatprep.subr.mxu0 0.0
        %390 = vmatpush2.msra.mxu0 0.0
        %391 = vmatprep.mubr.f32.mxu0 0.0
        %392 = vmatmul.mubr.f32.gmra.mxu0 %v322
        %v393 = vpop.f32.mrf.mxu0
        %v394 = vadd.f32 %v320, %v393
        %v395 = vpop.f32.mrf.mxu0
        %396 = vmatprep.mubr.f32.mxu0 0.0
        %397 = vmatmul.mubr.f32.gmra.mxu0 %v325
        %v398 = vpop.f32.mrf.mxu0
        %v399 = vadd.f32 %v320, %v398
        %v400 = vpop.f32.mrf.mxu0
        %401 = vdwg.mxu0
        %v402 = vmax.f32 %v394, 0.0
        %v403 = vmax.f32 %v399, 0.0
        %404 = vmatprep.subr.mxu0 0.0
        %405 = vmatpush1.msra.mxu0 0.0
        %406 = vmatprep.subr.mxu0 0.0
        %407 = vmatpush1.msra.mxu0 0.0
        %408 = vmatprep.subr.mxu0 0.0
        %409 = vmatpush1.msra.mxu0 0.0
        %410 = vmatprep.subr.mxu0 0.0
        %411 = vmatpush1.msra.mxu0 0.0
        %412 = vmatprep.subr.mxu0 0.0
        %413 = vmatpush1.msra.mxu0 0.0
        %414 = vmatprep.subr.mxu0 0.0
        %415 = vmatpush1.msra.mxu0 0.0
        %416 = vmatprep.subr.mxu0 0.0
        %417 = vmatpush1.msra.mxu0 0.0
        %418 = vmatprep.subr.mxu0 0.0
        %419 = vmatpush1.msra.mxu0 0.0
        %420 = vmatprep.subr.mxu0 0.0
        %421 = vmatpush1.msra.mxu0 0.0
        %422 = vmatprep.subr.mxu0 0.0
        %423 = vmatpush1.msra.mxu0 0.0
        %424 = vmatprep.subr.mxu0 0.0
        %425 = vmatpush1.msra.mxu0 0.0
        %426 = vmatprep.subr.mxu0 0.0
        %427 = vmatpush1.msra.mxu0 0.0
        %428 = vmatprep.subr.mxu0 0.0
        %429 = vmatpush1.msra.mxu0 0.0
        %430 = vmatprep.subr.mxu0 0.0
        %431 = vmatpush1.msra.mxu0 0.0
        %432 = vmatprep.subr.mxu0 0.0
        %433 = vmatpush1.msra.mxu0 %v403
        %434 = vmatprep.subr.mxu0 0.0
        %435 = vmatpush1.msra.mxu0 %v402
        %436 = vmatprep.subr.mxu0 0.0
        %437 = vmatpush2.msra.mxu0 0.0
        %438 = vmatprep.subr.mxu0 0.0
        %439 = vmatpush2.msra.mxu0 0.0
        %440 = vmatprep.subr.mxu0 0.0
        %441 = vmatpush2.msra.mxu0 0.0
        %442 = vmatprep.subr.mxu0 0.0
        %443 = vmatpush2.msra.mxu0 0.0
        %444 = vmatprep.subr.mxu0 0.0
        %445 = vmatpush2.msra.mxu0 0.0
        %446 = vmatprep.subr.mxu0 0.0
        %447 = vmatpush2.msra.mxu0 0.0
        %448 = vmatprep.subr.mxu0 0.0
        %449 = vmatpush2.msra.mxu0 0.0
        %450 = vmatprep.subr.mxu0 0.0
        %451 = vmatpush2.msra.mxu0 0.0
        %452 = vmatprep.subr.mxu0 0.0
        %453 = vmatpush2.msra.mxu0 0.0
        %454 = vmatprep.subr.mxu0 0.0
        %455 = vmatpush2.msra.mxu0 0.0
        %456 = vmatprep.subr.mxu0 0.0
        %457 = vmatpush2.msra.mxu0 0.0
        %458 = vmatprep.subr.mxu0 0.0
        %459 = vmatpush2.msra.mxu0 0.0
        %460 = vmatprep.subr.mxu0 0.0
        %461 = vmatpush2.msra.mxu0 0.0
        %462 = vmatprep.subr.mxu0 0.0
        %463 = vmatpush2.msra.mxu0 0.0
        %464 = vmatprep.subr.mxu0 0.0
        %465 = vmatpush2.msra.mxu0 0.0
        %466 = vmatprep.subr.mxu0 0.0
        %467 = vmatpush2.msra.mxu0 0.0
        %468 = vmatprep.mubr.f32.mxu0 0.0
        %469 = vmatmul.mubr.f32.gmra.mxu0 %v229
        %v470 = vpop.f32.mrf.mxu0
        %v471 = vadd.f32 0.0, %v470
        %v472 = vpop.f32.mrf.mxu0
        %473 = vmatprep.mubr.f32.mxu0 0.0
        %474 = vmatmul.mubr.f32.gmra.mxu0 %v231
        %v475 = vpop.f32.mrf.mxu0
        %v476 = vadd.f32 0.0, %v475
        %v477 = vpop.f32.mrf.mxu0
        %478 = vdwg.mxu0
        %481 = vrot.lane.b32.xlu0 %v402, 40
        %v482 = vpop.permute.xlu0 %481
        %483 = vrot.lane.b32.xlu0 %v403, 40
        %v484 = vpop.permute.xlu0 %483
        %vm487 = vcmask 326656
        %v488 = vsel %vm487, %v471, %v482
        %v489 = vsel %vm487, %v476, %v484
        %v490 = vlaneseq
        %v491 = vshrl.u32 %v490, 7
        %v492 = vsub.s32 0, %v491
        %v493 = vrot.slane %v219, %v492
        %vm494 = vcmask 654336
        %v496 = vsel %vm494, %v488, 0
        %v499 = vsel %vm494, %v489, 0
        %501 = vmatprep.subr.mxu0 0.0
        %502 = vmatpush1.msra.mxu0 0.0
        %503 = vmatprep.subr.mxu0 0.0
        %504 = vmatpush1.msra.mxu0 0.0
        %505 = vmatprep.subr.mxu0 0.0
        %506 = vmatpush1.msra.mxu0 0.0
        %507 = vmatprep.subr.mxu0 0.0
        %508 = vmatpush1.msra.mxu0 0.0
        %509 = vmatprep.subr.mxu0 0.0
        %510 = vmatpush1.msra.mxu0 0.0
        %511 = vmatprep.subr.mxu0 0.0
        %512 = vmatpush1.msra.mxu0 0.0
        %513 = vmatprep.subr.mxu0 0.0
        %514 = vmatpush1.msra.mxu0 %v215
        %515 = vmatprep.subr.mxu0 0.0
        %516 = vmatpush1.msra.mxu0 %v214
        %517 = vmatprep.subr.mxu0 0.0
        %518 = vmatpush1.msra.mxu0 %v213
        %519 = vmatprep.subr.mxu0 0.0
        %520 = vmatpush1.msra.mxu0 %v212
        %521 = vmatprep.subr.mxu0 0.0
        %522 = vmatpush1.msra.mxu0 %v211
        %523 = vmatprep.subr.mxu0 0.0
        %524 = vmatpush1.msra.mxu0 %v210
        %525 = vmatprep.subr.mxu0 0.0
        %526 = vmatpush1.msra.mxu0 %v209
        %527 = vmatprep.subr.mxu0 0.0
        %528 = vmatpush1.msra.mxu0 %v208
        %529 = vmatprep.subr.mxu0 0.0
        %530 = vmatpush1.msra.mxu0 %v207
        %531 = vmatprep.subr.mxu0 0.0
        %532 = vmatpush1.msra.mxu0 %v206
        %533 = vmatprep.subr.mxu0 0.0
        %534 = vmatpush2.msra.mxu0 0.0
        %535 = vmatprep.subr.mxu0 0.0
        %536 = vmatpush2.msra.mxu0 0.0
        %537 = vmatprep.subr.mxu0 0.0
        %538 = vmatpush2.msra.mxu0 0.0
        %539 = vmatprep.subr.mxu0 0.0
        %540 = vmatpush2.msra.mxu0 0.0
        %541 = vmatprep.subr.mxu0 0.0
        %542 = vmatpush2.msra.mxu0 0.0
        %543 = vmatprep.subr.mxu0 0.0
        %544 = vmatpush2.msra.mxu0 0.0
        %545 = vmatprep.subr.mxu0 0.0
        %546 = vmatpush2.msra.mxu0 0.0
        %547 = vmatprep.subr.mxu0 0.0
        %548 = vmatpush2.msra.mxu0 0.0
        %549 = vmatprep.subr.mxu0 0.0
        %550 = vmatpush2.msra.mxu0 0.0
        %551 = vmatprep.subr.mxu0 0.0
        %552 = vmatpush2.msra.mxu0 0.0
        %553 = vmatprep.subr.mxu0 0.0
        %554 = vmatpush2.msra.mxu0 0.0
        %555 = vmatprep.subr.mxu0 0.0
        %556 = vmatpush2.msra.mxu0 0.0
        %557 = vmatprep.subr.mxu0 0.0
        %558 = vmatpush2.msra.mxu0 0.0
        %559 = vmatprep.subr.mxu0 0.0
        %560 = vmatpush2.msra.mxu0 0.0
        %561 = vmatprep.subr.mxu0 0.0
        %562 = vmatpush2.msra.mxu0 0.0
        %563 = vmatprep.subr.mxu0 0.0
        %564 = vmatpush2.msra.mxu0 0.0
        %565 = vmatprep.mubr.f32.mxu0 0.0
        %566 = vmatmul.mubr.f32.gmra.mxu0 %v496
        %v567 = vpop.f32.mrf.mxu0
        %v568 = vadd.f32 %v493, %v567
        %v569 = vpop.f32.mrf.mxu0
        %570 = vmatprep.mubr.f32.mxu0 0.0
        %571 = vmatmul.mubr.f32.gmra.mxu0 %v499
        %v572 = vpop.f32.mrf.mxu0
        %v573 = vadd.f32 %v493, %v572
        %v574 = vpop.f32.mrf.mxu0
        %575 = vdwg.mxu0
        %576 = vmax.xlane.f32.xlu0 %v568
        %v577 = vpop.xlane.xlu0 %576
        %578 = vmax.xlane.f32.xlu0 %v573
        %v579 = vpop.xlane.xlu0 %578
        %v580 = vsub.f32 %v568, %v577
        %v581 = vsub.f32 %v573, %v579
        %v582 = vmul.f32 %v580, 1.442695
        %v583 = vpow.pop %v582
        %v584 = vmul.f32 %v581, 1.442695
        %v585 = vpow.pop %v584
        %586 = vadd.xlane.f32.xlu0 %v583
        %v587 = vpop.xlane.xlu0 %586
        %588 = vadd.xlane.f32.xlu0 %v585
        %v589 = vpop.xlane.xlu0 %588
        %v590 = vlog2.pop %v587
        %v591 = vmul.f32 %v590, 0.6931472
        %v592 = vlog2.pop %v589
        %v593 = vmul.f32 %v592, 0.6931472
        %v594 = vsub.f32 %v580, %v591
        %v595 = vsub.f32 %v581, %v593
        %596 = vst [vmem:[%s203] sm:$0xff] %v594
        %597 = vst [vmem:[%s203 + $0x8] sm:$0xff] %v595
        %s598 = sand.u32 %s97, 1
        %s599 = scalar_lea.sflag [#allocation4], %s598
        %s600 = sand.u32 %s97, 1
        %s601 = smul.addr %s600, 16
        %s602 = scalar_lea.vmem [#allocation7], %s601
        // Predicated region
        $region41: #{tpu_custom_call.1} parent=31 // pred_check
          %p603 = pneg %p107
        $region42: #{tpu_custom_call.1} parent=31 // pred_check_branch
          %605 = sbr.rel (%p603) target = $region44
        $region43: #{tpu_custom_call.1} parent=31 // pred_region
          %s607 = ssub.s32 256, 256
          %608 = vsyncadd %s599, %s607
          %s609 = smul.addr %s21, 2
          %s610 = smul.addr %s609, 128
          %s611 = scalar_lea.hbm %s3, %s610
          %s612 = sshll.u32 %s602, 4
          %s613 = int_to_ptr.vmem [resolvable:$true] %s612
          %618 = dma.vmem_to_hbm [thread:$0]  %s613, 256, %s611, %s599, 128, 128, 8
        $region44: #{tpu_custom_call.1} parent=31 // pred_fallthru
          _
      $region32: #{tpu_custom_call.1} parent=5 // pred_fallthru
        _
      %p619 = scmp.le.s32.totalorder 2, %s16
      // Predicated region
      $region45: #{tpu_custom_call.1} parent=5 // pred_check
        %p620 = pneg %p619
      $region46: #{tpu_custom_call.1} parent=5 // pred_check_branch
        %622 = sbr.rel (%p620) target = $region48
      $region47: #{tpu_custom_call.1} parent=5 // pred_region
        %s623 = ssub.s32 %s16, 2
        // Predicated region
        $region49: #{tpu_custom_call.1} parent=47 // pred_check
          %p624 = pneg %p113
        $region50: #{tpu_custom_call.1} parent=47 // pred_check_branch
          %626 = sbr.rel (%p624) target = $region52
        $region51: #{tpu_custom_call.1} parent=47 // pred_region
          %s627 = sand.u32 %s98, 1
          %s628 = scalar_lea.sflag [#allocation4], %s627
          %s629 = sand.u32 %s98, 1
          %s630 = smul.addr %s629, 16
          %s631 = scalar_lea.vmem [#allocation7], %s630
          %632 = dma.done %s628, 256
        $region52: #{tpu_custom_call.1} parent=47 // pred_fallthru
          _
      $region48: #{tpu_custom_call.1} parent=5 // pred_fallthru
        _
    $region6: #{tpu_custom_call.1} parent=1 // loop_footer
      %s20 = sadd.s32 1, %s16
    $region7: #{tpu_custom_call.1} parent=1 // loop_footer_branch
      %15 = sbr.rel target = $region3
    $region8: #{tpu_custom_call.1} parent=1 // loop_exit
      _
    %633 = vsyncpa [#allocation3], 1
    %s634 = scalar_lea.sflag [#allocation3], 1
    %635 = vsyncpa %s634, 1
    %636 = vsyncpa [#allocation6], 1
    %637 = vsyncpa [#allocation4], 1
    %s638 = scalar_lea.sflag [#allocation4], 1
    %639 = vsyncpa %s638, 1

</llo_original>
